<compile_context>
chip_gen: v5e
topology: v5e:2x2
jax: 0.10.0
libtpu: 0.0.40
codegen_flags: <defaults>
</compile_context>

<pallas_src>
import jax
import jax.numpy as jnp
from jax.experimental import pallas as pl
from jax.experimental.pallas import tpu as pltpu

_NUM_LAYERS = 4      # len(('3', '8', '15', '22')); all four are nn.ReLU
_LANES = 128
_TILE_ROWS = 8192    # 8192 x 128 f32 = 4 MiB per input block per buffer
# 3 buffers x 2 inputs x 4 MiB = 24 MiB worst case (v7x, Buffered(3)); 32 MiB
# scoped limit leaves headroom and is <= physical VMEM on every generation
# (v5e/v6e 128 MiB, v7x 64 MiB per TensorCore).
_VMEM_LIMIT = 32 * 1024 * 1024


def _is_v7x():
    """True on TPU generations with 2 TensorCores per device (v7x)."""
    try:
        kind = jax.devices()[0].device_kind
    except Exception:
        return False
    return "7" in kind


def _small_kernel(x_ref, y_ref, o_ref):
    """Single-block path: whole array in one tile, one grid step."""
    x = jnp.maximum(x_ref[...].astype(jnp.float32), 0.0)
    y = jnp.maximum(y_ref[...].astype(jnp.float32), 0.0)
    o_ref[0, 0] = jnp.sum(jnp.abs(x - y))


def _make_tiled_kernel(rows, tile_rows, tiles_per_core, num_tiles, needs_mask):
    sub_groups = tile_rows // 8

    def kernel(x_ref, y_ref, o_ref, acc_ref):
        c = pl.program_id(0)     # "parallel": splits across the 2 TCs on v7x
        i = pl.program_id(1)     # "arbitrary": sequential reduction axis

        @pl.when(i == 0)
        def _init():
            acc_ref[...] = jnp.zeros_like(acc_ref)

        # Single ReLU + abs-diff pass; the 4x factor is applied exactly in the
        # wrapper (ReLU is idempotent).
        x = jnp.maximum(x_ref[...].astype(jnp.float32), 0.0)
        y = jnp.maximum(y_ref[...].astype(jnp.float32), 0.0)
        d = jnp.abs(x - y)

        def _accumulate(vals):
            # vreg-shaped (8,128) accumulator: per-step work is pure VPU adds
            # that co-issue with the DMA; a single cross-lane reduce at the end.
            acc_ref[...] += vals.reshape(sub_groups, 8, _LANES).sum(axis=0)

        if needs_mask:
            linear = c * tiles_per_core + i
            # Only the last real (possibly ragged) block and any clamped
            # duplicate trailing blocks ever need masking -> gate the mask so
            # the hot path stays pure max/sub/abs/add.
            @pl.when(linear < num_tiles - 1)
            def _fast():
                _accumulate(d)

            @pl.when(linear >= num_tiles - 1)
            def _masked():
                # Unclamped linear index: duplicate blocks get row0 >= rows and
                # contribute exactly zero (no double counting of the last tile).
                row0 = linear * tile_rows
                gr = row0 + jax.lax.broadcasted_iota(jnp.int32, (tile_rows, 1), 0)
                _accumulate(jnp.where(gr < rows, d, 0.0))
        else:
            _accumulate(d)

        @pl.when(i == tiles_per_core - 1)
        def _finalize():
            o_ref[0, 0] = jnp.sum(acc_ref[...])

    return kernel


def _abs_diff_relu_sum(x2, y2, tile_rows, ncores):
    """sum(|relu(x) - relu(y)|) over lane-dense (rows, 128) operands."""
    rows = x2.shape[0]

    if rows <= tile_rows:
        # One block equal to the full array dims (always a legal BlockSpec);
        # no padding, no pipeline overhead for small inputs.
        out = pl.pallas_call(
            _small_kernel,
            out_shape=jax.ShapeDtypeStruct((1, 1), jnp.float32),
            grid=(1,),
            in_specs=[
                pl.BlockSpec((rows, _LANES), lambda i: (0, 0)),
                pl.BlockSpec((rows, _LANES), lambda i: (0, 0)),
            ],
            out_specs=pl.BlockSpec((1, 1), lambda i: (0, 0),
                                   memory_space=pltpu.SMEM),
            compiler_params=pltpu.CompilerParams(
                dimension_semantics=("arbitrary",),
                vmem_limit_bytes=_VMEM_LIMIT),
        )(x2, y2)
        return out[0, 0]

    # Generation-aware core split: the explicit 2-way "parallel" axis only pays
    # off on 2-TensorCore chips (v7x); on v5e/v6e it would just add duplicate
    # trailing DMAs and masking work.
    if ncores is None:
        ncores = 2 if _is_v7x() else 1

    num_tiles = pl.cdiv(rows, tile_rows)          # >= 2 here
    tiles_per_core = pl.cdiv(num_tiles, ncores)
    total_blocks = ncores * tiles_per_core
    needs_clamp = total_blocks > num_tiles        # only ncores=2 with odd tiles
    needs_mask = total_blocks * tile_rows != rows

    def in_index_map(c, i):
        b = c * tiles_per_core + i
        if needs_clamp:
            # At most one extra trailing block per call re-reads the last real
            # tile; its contribution is zeroed by the gated row mask.
            b = jnp.minimum(b, num_tiles - 1)
        return (b, 0)

    # Deeper pipelining on v7x (short per-step compute exposes DMA latency);
    # standard double-buffering elsewhere.  Both fit the 32 MiB scoped limit.
    nbuf = 3 if _is_v7x() else 2
    in_spec = pl.BlockSpec((tile_rows, _LANES), in_index_map,
                           pipeline_mode=pl.Buffered(nbuf))

    kernel = _make_tiled_kernel(rows, tile_rows, tiles_per_core,
                                num_tiles, needs_mask)

    n_elems = rows * _LANES
    itemsize = jnp.dtype(x2.dtype).itemsize
    cost = pl.CostEstimate(flops=5 * n_elems, transcendentals=0,
                           bytes_accessed=2 * n_elems * itemsize + 4 * ncores)

    partial = pl.pallas_call(
        kernel,
        out_shape=jax.ShapeDtypeStruct((ncores, 1), jnp.float32),
        grid=(ncores, tiles_per_core),
        in_specs=[in_spec, in_spec],
        out_specs=pl.BlockSpec((1, 1), lambda c, i: (c, 0),
                               memory_space=pltpu.SMEM),
        scratch_shapes=[pltpu.VMEM((8, _LANES), jnp.float32)],
        compiler_params=pltpu.CompilerParams(
            dimension_semantics=("parallel", "arbitrary"),
            vmem_limit_bytes=_VMEM_LIMIT),
        cost_estimate=cost,
    )(x2, y2)
    return jnp.sum(partial)


def perceptual_loss(recon, target, *, tile_rows=_TILE_ROWS, ncores=None):
    # Inputs follow PyTorch NCHW [B, C, H, W].  The computation is a
    # layout-agnostic elementwise op + global mean, so we present both
    # operands as lane-dense (rows, 128) slabs in their ORIGINAL dtype (bf16
    # inputs stay bf16 in HBM; the kernel upcasts in VMEM), halving HBM
    # traffic for bf16 activations.  For the typical case (n % 128 == 0) the
    # reshape is free; ragged tiles are handled by a pl.when-gated row mask.
    assert recon.shape == target.shape
    assert tile_rows % 8 == 0 and tile_rows >= 8
    n = recon.size

    xf = recon.reshape(-1)
    yf = target.reshape(-1)
    if n % _LANES != 0:
        # Rare fallback; zero padding contributes |relu(0) - relu(0)| = 0.
        pad = _LANES - (n % _LANES)
        xf = jnp.pad(xf, (0, pad))
        yf = jnp.pad(yf, (0, pad))
    rows = xf.size // _LANES
    x2 = xf.reshape(rows, _LANES)
    y2 = yf.reshape(rows, _LANES)

    total = _abs_diff_relu_sum(x2, y2, tile_rows, ncores)

    # ReLU is idempotent, so the four L1Loss terms of the reference forward
    # are identical: loss = 4 * sum(|relu(x) - relu(y)|) / n.
    return total * jnp.float32(_NUM_LAYERS) / jnp.float32(n)


def _reference(recon, target):
    # Pure-JAX reference of the literal PyTorch forward semantics.
    x, y = recon, target
    ref = jnp.float32(0.0)
    for _ in range(_NUM_LAYERS):
        x = jnp.maximum(x, 0.0)
        y = jnp.maximum(y, 0.0)
        ref = ref + jnp.mean(jnp.abs(x - y))
    return ref


if __name__ == "__main__":
    key = jax.random.PRNGKey(0)
    k1, k2, k3, k4, k5, k6 = jax.random.split(key, 6)

    loss_fn = jax.jit(perceptual_loss, static_argnames=("tile_rows", "ncores"))

    # 1) Small NCHW case -> single-block path.
    recon = jax.random.normal(k1, (2, 4, 16, 16), dtype=jnp.float32)
    target = jax.random.normal(k2, (2, 4, 16, 16), dtype=jnp.float32)
    loss = jax.block_until_ready(loss_fn(recon, target))
    ref = _reference(recon, target)
    assert jnp.allclose(loss, ref, rtol=1e-5, atol=1e-6), (loss, ref)

    # 2) Exactly-tiled path (needs_mask=False): 2*4*128*128 = 131072 elements
    #    = 1024 rows; tile_rows=512 -> 2 full tiles, auto core count.
    recon2 = jax.random.normal(k3, (2, 4, 128, 128), dtype=jnp.float32)
    target2 = jax.random.normal(k4, (2, 4, 128, 128), dtype=jnp.float32)
    loss2 = jax.block_until_ready(loss_fn(recon2, target2, tile_rows=512))
    ref2 = _reference(recon2, target2)
    assert jnp.allclose(loss2, ref2, rtol=5e-5, atol=1e-6), (loss2, ref2)

    # 3) Ragged + dual-core (clamp + gated mask) path; ncores forced to 2 so
    #    the v7x code path is compile-tested on any generation:
    #    2*5*205*256 = 524800 elements = 4100 rows; tile 512 -> 9 tiles.
    recon3 = jax.random.normal(k5, (2, 5, 205, 256), dtype=jnp.float32)
    target3 = jax.random.normal(k6, (2, 5, 205, 256), dtype=jnp.float32)
    loss3 = jax.block_until_ready(
        loss_fn(recon3, target3, tile_rows=512, ncores=2))
    ref3 = _reference(recon3, target3)
    assert jnp.allclose(loss3, ref3, rtol=5e-5, atol=1e-6), (loss3, ref3)

    print("KERNEL_OK")
</pallas_src>

<mosaic_0001>
module attributes {stable_mosaic.version = 11 : i64} {
  func.func @_small_kernel(%arg0: i32, %arg1: memref<16x128xf32, #tpu.memory_space<vmem>>, %arg2: memref<16x128xf32, #tpu.memory_space<vmem>>, %arg3: memref<1x1xf32, #tpu.memory_space<smem>>) attributes {dimension_semantics = [#tpu.dimension_semantics<arbitrary>], iteration_bounds = array<i64: 1>, scalar_prefetch = 0 : i64, scratch_operands = 0 : i64, tpu.core_type = #tpu.core_type<tc>, window_params = [{pipeline_mode = #tpu.pipeline_mode<synchronous>, transform_indices = @transform_0, window_bounds = array<i64: 16, 128>}, {pipeline_mode = #tpu.pipeline_mode<synchronous>, transform_indices = @transform_1, window_bounds = array<i64: 16, 128>}, {transform_indices = @transform_2, window_bounds = array<i64: 1, 1>}]} {
    %c0 = arith.constant 0 : index
    %c0_0 = arith.constant 0 : index
    %0 = vector.load %arg1[%c0, %c0_0] : memref<16x128xf32, #tpu.memory_space<vmem>>, vector<16x128xf32>
    %cst = arith.constant 0.000000e+00 : f32
    %1 = vector.broadcast %cst : f32 to vector<16x128xf32>
    %2 = arith.maximumf %0, %1 : vector<16x128xf32>
    %c0_1 = arith.constant 0 : index
    %c0_2 = arith.constant 0 : index
    %3 = vector.load %arg2[%c0_1, %c0_2] : memref<16x128xf32, #tpu.memory_space<vmem>>, vector<16x128xf32>
    %cst_3 = arith.constant 0.000000e+00 : f32
    %4 = vector.broadcast %cst_3 : f32 to vector<16x128xf32>
    %5 = arith.maximumf %3, %4 : vector<16x128xf32>
    %6 = arith.subf %2, %5 : vector<16x128xf32>
    %7 = math.absf %6 : vector<16x128xf32>
    %8 = vector.shape_cast %7 : vector<16x128xf32> to vector<1x16x128xf32>
    %cst_4 = arith.constant dense<0.000000e+00> : vector<1xf32>
    %9 = vector.multi_reduction <add>, %8, %cst_4 [1, 2] : vector<1x16x128xf32> to vector<1xf32>
    %10 = vector.shape_cast %9 : vector<1xf32> to vector<1x1x1xf32>
    %11 = vector.extract %10[0, 0, 0] : f32 from vector<1x1x1xf32>
    %c0_5 = arith.constant 0 : index
    %c0_6 = arith.constant 0 : index
    %12 = memref.load %arg3[%c0_5, %c0_6] : memref<1x1xf32, #tpu.memory_space<smem>>
    memref.store %11, %arg3[%c0_5, %c0_6] : memref<1x1xf32, #tpu.memory_space<smem>>
    return
  }
  func.func @transform_0(%arg0: i32) -> (i32, i32) {
    %c0_i32 = arith.constant 0 : i32
    %c0_i32_0 = arith.constant 0 : i32
    %c0_i32_1 = arith.constant 0 : i32
    return %c0_i32, %c0_i32_0 : i32, i32
  }
  func.func @transform_1(%arg0: i32) -> (i32, i32) {
    %c0_i32 = arith.constant 0 : i32
    %c0_i32_0 = arith.constant 0 : i32
    %c0_i32_1 = arith.constant 0 : i32
    return %c0_i32, %c0_i32_0 : i32, i32
  }
  func.func @transform_2(%arg0: i32) -> (i32, i32) {
    %c0_i32 = arith.constant 0 : i32
    %c0_i32_0 = arith.constant 0 : i32
    %c0_i32_1 = arith.constant 0 : i32
    return %c0_i32, %c0_i32_0 : i32, i32
  }
}

</mosaic_0001>

<llo_original>
// kernel: perceptual_loss.1
$region0: #{perceptual_loss.1}
  #allocation0 [shape = 'u32[]', space=smem, size = 0x4, offset = 0x4, fixed_abs, tag = 'smem constant byte address 0x4 - core index']
  #allocation1 [shape = 'u32[72,128]{1,0:T(1,128)}', space=vmem, size = 0x9000, scoped, tag = 'internal scratch']
  %s0 = inlined_call_operand.vmem [shape: f32[16,128], index: 0, kind: input, shape index: {}]
  %s1 = inlined_call_operand.vmem [shape: f32[16,128], index: 1, kind: input, shape index: {}]
  %s2 = inlined_call_operand.hbm [shape: f32[1,1], index: 2, kind: output, shape index: {}]
  %s3 = sld [smem:[#allocation0]]
  $region18: #{perceptual_loss.1} parent=0
    _
  %s5 = ssub.s32 1, %s3
  %s6 = scalar_select 0, %s5, %s3
  $region1: #{perceptual_loss.1} parent=0
    #allocation2 [shape = 'u8[512]{0}', space=smem, size = 0x200, scoped, tag = 'output window, operand 0, single buffered']
    #allocation3 [shape = 's32[1]{0}', space=sflag, size = 0x4, scoped, tag = 'scoped memory for perceptual_loss.1']
    %7 = vsyncpa [#allocation3], 0
    // Predicated region
    $region2: #{perceptual_loss.1} parent=1 // pred_check
      _
    $region3: #{perceptual_loss.1} parent=1 // pred_check_branch
      %9 = sbr.rel (0) target = $region5
    $region4: #{perceptual_loss.1} parent=1 // pred_region
      _
    $region5: #{perceptual_loss.1} parent=1 // pred_fallthru
      _
    // Predicated region
    $region6: #{perceptual_loss.1} parent=1 // pred_check
      _
    $region7: #{perceptual_loss.1} parent=1 // pred_check_branch
      %11 = sbr.rel (0) target = $region9
    $region8: #{perceptual_loss.1} parent=1 // pred_region
      _
    $region9: #{perceptual_loss.1} parent=1 // pred_fallthru
      _
    %v12 = vld [vmem:[%s0] sm:$0xff]
    %v13 = vld [vmem:[%s0 + $0x8] sm:$0xff]
    %v14 = vmax.f32 %v12, 0.0
    %v15 = vmax.f32 %v13, 0.0
    %v16 = vld [vmem:[%s1] sm:$0xff]
    %v17 = vld [vmem:[%s1 + $0x8] sm:$0xff]
    %v18 = vmax.f32 %v16, 0.0
    %v19 = vmax.f32 %v17, 0.0
    %v20 = vsub.f32 %v14, %v18
    %v21 = vsub.f32 %v15, %v19
    %v22 = vand.u32 2147483647, %v20
    %v23 = vand.u32 2147483647, %v21
    %v24 = vadd.f32 %v22, %v23
    %25 = vadd.xlane.f32.xlu0 %v24
    %v26 = vpop.xlane.xlu0 %25
    %v27 = vrot.slane %v26, 4
    %v28 = vadd.f32 %v26, %v27
    %v29 = vrot.slane %v28, 2
    %v30 = vadd.f32 %v28, %v29
    %v31 = vrot.slane %v30, 1
    %v32 = vadd.f32 %v30, %v31
    %s33 = vtos %v32
    %s34 = scalar_lea.smem [#allocation2], 0
    %35 = sst [smem:[%s34]] %s33
    // Predicated region
    $region10: #{perceptual_loss.1} parent=1 // pred_check
      _
    $region11: #{perceptual_loss.1} parent=1 // pred_check_branch
      %37 = sbr.rel (0) target = $region13
    $region12: #{perceptual_loss.1} parent=1 // pred_region
      %39 = vsyncadd [#allocation3], 0
      %s41 = sshll.u32 %s2, 4
      %s42 = int_to_ptr.hbm [resolvable:$true] %s41
      %44 = dma.smem_to_hbm [#allocation2], 16, %s42, [#allocation3]
    $region13: #{perceptual_loss.1} parent=1 // pred_fallthru
      _
    // Predicated region
    $region14: #{perceptual_loss.1} parent=1 // pred_check
      _
    $region15: #{perceptual_loss.1} parent=1 // pred_check_branch
      %46 = sbr.rel (0) target = $region17
    $region16: #{perceptual_loss.1} parent=1 // pred_region
      %48 = dma.done [#allocation3], 16
    $region17: #{perceptual_loss.1} parent=1 // pred_fallthru
      _
    %49 = sfence
    %50 = vsyncpa [#allocation3], 1

</llo_original>
